<compile_context>
chip_gen: v5e
topology: v5e:2x2
jax: 0.10.0
libtpu: 0.0.40
codegen_flags: <defaults>
</compile_context>

<pallas_src>
import jax
import jax.numpy as jnp
from jax import lax
from jax.experimental import pallas as pl
from jax.experimental.pallas import tpu as pltpu


def _make_kernel(batch, num_cls, cls_id, n_valid, tile_n, loss_type,
                 threshold=0.3, approx_recip=True):
    """Kernel over one (batch, 1, C, tile_n) block of a single anchor.

    Per-lane confidences accumulate into a (batch, tile_n) VMEM scratch across
    the lane-tile grid axis; the single cross-lane reduce + tiny store happen
    only on the last tile of each anchor.
    """
    is_max = (loss_type == "max_approach")
    neutral = float("-inf") if is_max else 0.0
    has_partial = (n_valid % tile_n) != 0

    def recip(x):
        return pl.reciprocal(x, approx=True) if approx_recip else 1.0 / x

    def kernel(x_ref, out_ref, acc_ref):
        j = pl.program_id(1)
        nj = pl.num_programs(1)

        @pl.when(j == 0)
        def _():
            acc_ref[...] = jnp.full((batch, tile_n), neutral, dtype=jnp.float32)

        blk = x_ref[...][:, 0]                           # (b, C, tile_n), HBM dtype
        # Objectness sigmoid via EUP exp + reciprocal (no lax.logistic).
        z = blk[:, 4, :].astype(jnp.float32)             # (b, tile_n)
        obj = recip(1.0 + jnp.exp(-z))
        # Target-shifted softmax: p[cls] = 1 / sum_k exp(l_k - l_cls).
        logits = blk[:, 5:5 + num_cls, :].astype(jnp.float32)   # (b, nc, tile_n)
        shifted = logits - logits[:, cls_id:cls_id + 1, :]
        denom = jnp.sum(jnp.exp(shifted), axis=1)        # (b, tile_n); cls term == 1
        person = recip(denom)
        conf = obj * person          # loss_target(obj, cls) = obj * cls

        def accumulate(c):
            if is_max:
                acc_ref[...] = jnp.maximum(acc_ref[...], c)
            else:
                pen = jnp.square(jnp.maximum(c - threshold, 0.0))
                acc_ref[...] = acc_ref[...] + pen

        if has_partial:
            # Only the last tile contains out-of-bounds (garbage) lanes.
            @pl.when(j != nj - 1)
            def _():
                accumulate(conf)

            @pl.when(j == nj - 1)
            def _():
                col = j * tile_n + lax.broadcasted_iota(
                    jnp.int32, (batch, tile_n), 1)
                accumulate(jnp.where(col < n_valid, conf, neutral))
        else:
            accumulate(conf)

        @pl.when(j == nj - 1)
        def _():
            if is_max:
                out_ref[0] = jnp.max(acc_ref[...], axis=1, keepdims=True)
            else:
                out_ref[0] = jnp.sum(acc_ref[...], axis=1, keepdims=True)

    return kernel


def _layer_partials(x, cls_id, num_cls, loss_type, *, target_block_bytes,
                    max_tile, approx_recip):
    """One pallas_call per YOLO layer -> (3, b) per-anchor partial results."""
    C = 5 + num_cls
    if x.ndim == 3:
        x = x[None]
    b, ch, h, w = x.shape
    assert ch == 3 * C, f"expected {3 * C} channels, got {ch}"
    n = h * w

    # (b, 3*C, h, w) -> (b, 3, C, h*w): no channel slicing / cross-layer concat
    # is materialised; the kernel reads this slab directly.
    xr = x.reshape(b, 3, C, n)
    # TODO(synk): if profiling shows XLA materialises this reshape as an HBM
    #             relayout copy, pass the raw layer with memory_space=pl.ANY
    #             and DMA the per-anchor channel windows manually.

    itemsize = jnp.dtype(x.dtype).itemsize
    # Lane tile: each grid step should move ~1-2 MiB to amortise the
    # ~0.35 us/step pipeline overhead; clamp to the layer size.
    t = target_block_bytes // max(1, b * C * itemsize)
    t = max(128, min(max_tile, (t // 128) * 128))
    if t >= n:
        tile_n = n           # single full-dim block (no 128-divisibility needed)
    else:
        tile_n = t           # multiple of 128; last (partial) tile masked in-kernel
    n_tiles = pl.cdiv(n, tile_n)

    # Explicit VMEM budget: double-buffered input block + f32 intermediates
    # (logits, shifted, exp) + accumulator, with headroom.  Clamped well under
    # v7x's 64 MiB physical VMEM.
    blk_bytes = b * C * tile_n * itemsize
    f32_rows = b * (num_cls + 2) * tile_n * 4
    vmem_bytes = 2 * blk_bytes + 3 * f32_rows + 4 * b * tile_n * 4 + (2 << 20)
    vmem_bytes = int(min(max(vmem_bytes, 16 << 20), 40 << 20))

    kernel = _make_kernel(b, num_cls, cls_id, n, tile_n, loss_type,
                          approx_recip=approx_recip)

    out = pl.pallas_call(
        kernel,
        out_shape=jax.ShapeDtypeStruct((3, b, 1), jnp.float32),
        grid_spec=pltpu.PrefetchScalarGridSpec(
            num_scalar_prefetch=0,
            grid=(3, n_tiles),                       # (anchor, lane tile)
            in_specs=[pl.BlockSpec((b, 1, C, tile_n),
                                   lambda a, j: (0, a, 0, j))],
            out_specs=pl.BlockSpec((1, b, 1), lambda a, j: (a, 0, 0)),
            scratch_shapes=[pltpu.VMEM((b, tile_n), jnp.float32)],
        ),
        # Anchor axis "parallel": keeps both v7x TensorCores busy at batch==1.
        # TODO(synk): on v5e, if xprof still shows exposed DMA with f32 slabs,
        #             add pipeline_mode=pl.Buffered(3) to the input BlockSpec.
        compiler_params=pltpu.CompilerParams(
            dimension_semantics=("parallel", "arbitrary"),
            vmem_limit_bytes=vmem_bytes),
    )(xr)
    return out[:, :, 0]                              # (3, b)


def yolov4_feature_output_manage(yolo_outputs, cls_id, num_cls, loss_type,
                                 target_block_bytes=2 << 20, max_tile=32768,
                                 approx_recip=True):
    """JAX/Pallas equivalent of the PyTorch module's forward.

    Note: approx_recip=True uses pl.reciprocal(approx=True); it introduces a
    small relative error per detection probability.  Pass approx_recip=False
    for exact division if downstream gradients are sensitive.
    """
    if loss_type not in ("max_approach", "threshold_approach"):
        raise ValueError(f"unknown loss_type: {loss_type}")
    parts = [_layer_partials(x, cls_id, num_cls, loss_type,
                             target_block_bytes=target_block_bytes,
                             max_tile=max_tile, approx_recip=approx_recip)
             for x in yolo_outputs]
    allp = jnp.concatenate(parts, axis=0)            # (3 * n_layers, b): tiny
    if loss_type == "max_approach":
        return jnp.max(allp, axis=0)                 # (b,)
    return jnp.sum(allp, axis=0)                     # (b,)


def _reference(yolo_outputs, cls_id, num_cls, loss_type):
    """Pure-JAX reference replicating the PyTorch semantics."""
    C = 5 + num_cls
    slabs = []
    for x in yolo_outputs:
        b, ch, h, w = x.shape
        y = x.reshape(b, 3, C, h * w).transpose(0, 2, 1, 3).reshape(b, C, 3 * h * w)
        slabs.append(y)
    total = jnp.concatenate(slabs, axis=2)
    objectness = jax.nn.sigmoid(total[:, 4, :])
    class_cond = jax.nn.softmax(total[:, 5:5 + num_cls, :], axis=1)
    person = class_cond[:, cls_id, :]
    conf = objectness * person
    if loss_type == "max_approach":
        return jnp.max(conf, axis=1)
    pen = jnp.square(jnp.maximum(conf - 0.3, 0.0))
    return jnp.sum(pen, axis=1)


if __name__ == "__main__":
    key = jax.random.PRNGKey(0)
    batch, num_cls, cls_id = 2, 4, 0
    C = 5 + num_cls                    # 9 -> 27 channels per layer
    layer_shapes = [
        (batch, 3 * C, 4, 4),
        (batch, 3 * C, 8, 8),
        (batch, 3 * C, 16, 16),
    ]
    keys = jax.random.split(key, len(layer_shapes))
    yolo_outputs = [jax.random.normal(k, s, dtype=jnp.float32)
                    for k, s in zip(keys, layer_shapes)]

    for lt in ("max_approach", "threshold_approach"):
        out = yolov4_feature_output_manage(yolo_outputs, cls_id, num_cls, lt)
        out = jax.block_until_ready(out)
        ref = _reference(yolo_outputs, cls_id, num_cls, lt)
        assert out.shape == (batch,)
        # Tolerance loosened for pl.reciprocal(approx=True) in sigmoid/softmax.
        assert jnp.allclose(out, ref, atol=1e-3, rtol=2e-2), (lt, out, ref)

    print("KERNEL_OK")
</pallas_src>

<mosaic_0001>
module attributes {stable_mosaic.version = 11 : i64} {
  func.func @kernel(%arg0: i32, %arg1: i32, %arg2: memref<2x1x9x16xf32, #tpu.memory_space<vmem>>, %arg3: memref<1x2x1xf32, #tpu.memory_space<vmem>>, %arg4: memref<2x16xf32, #tpu.memory_space<vmem>>) attributes {dimension_semantics = [#tpu.dimension_semantics<parallel>, #tpu.dimension_semantics<arbitrary>], iteration_bounds = array<i64: 3, 1>, scalar_prefetch = 0 : i64, scratch_operands = 1 : i64, tpu.core_type = #tpu.core_type<tc>, window_params = [{transform_indices = @transform_0, window_bounds = array<i64: 2, 1, 9, 16>}, {transform_indices = @transform_1, window_bounds = array<i64: 1, 2, 1>}]} {
    %c0_i32 = arith.constant 0 : i32
    %0 = arith.cmpi eq, %arg1, %c0_i32 : i32
    %1 = arith.extui %0 : i1 to i32
    %c0_i32_0 = arith.constant 0 : i32
    %2 = arith.cmpi ne, %1, %c0_i32_0 : i32
    scf.if %2 {
      %cst_12 = arith.constant 0xFF800000 : f32
      %27 = vector.broadcast %cst_12 : f32 to vector<2x16xf32>
      %c0_13 = arith.constant 0 : index
      %c0_14 = arith.constant 0 : index
      %28 = vector.load %arg4[%c0_13, %c0_14] : memref<2x16xf32, #tpu.memory_space<vmem>>, vector<2x16xf32>
      tpu.vector_store %arg4[%c0_13, %c0_14], %27 {strides = array<i32>} : memref<2x16xf32, #tpu.memory_space<vmem>>, vector<2x16xf32>,
    } else {
    }
    %c0 = arith.constant 0 : index
    %c0_1 = arith.constant 0 : index
    %c0_2 = arith.constant 0 : index
    %c0_3 = arith.constant 0 : index
    %3 = vector.load %arg2[%c0, %c0_1, %c0_2, %c0_3] : memref<2x1x9x16xf32, #tpu.memory_space<vmem>>, vector<2x1x9x16xf32>
    %4 = vector.shape_cast %3 : vector<2x1x9x16xf32> to vector<2x9x16xf32>
    %5 = vector.extract_strided_slice %4 {offsets = [0, 4, 0], sizes = [2, 1, 16], strides = [1, 1, 1]} : vector<2x9x16xf32> to vector<2x1x16xf32>
    %6 = vector.shape_cast %5 : vector<2x1x16xf32> to vector<2x16xf32>
    %cst = arith.constant 0.000000e+00 : f32
    %7 = vector.broadcast %cst : f32 to vector<2x16xf32>
    %8 = arith.subf %7, %6 : vector<2x16xf32>
    %9 = math.exp %8 : vector<2x16xf32>
    %cst_4 = arith.constant 1.000000e+00 : f32
    %10 = vector.broadcast %cst_4 : f32 to vector<2x16xf32>
    %11 = arith.addf %10, %9 : vector<2x16xf32>
    %12 = tpu.reciprocal %11 {approx = true} : vector<2x16xf32> -> vector<2x16xf32>
    %13 = vector.extract_strided_slice %4 {offsets = [0, 5, 0], sizes = [2, 4, 16], strides = [1, 1, 1]} : vector<2x9x16xf32> to vector<2x4x16xf32>
    %14 = vector.extract_strided_slice %13 {offsets = [0, 0, 0], sizes = [2, 1, 16], strides = [1, 1, 1]} : vector<2x4x16xf32> to vector<2x1x16xf32>
    %15 = vector.broadcast %14 : vector<2x1x16xf32> to vector<2x4x16xf32>
    %16 = arith.subf %13, %15 : vector<2x4x16xf32>
    %17 = math.exp %16 : vector<2x4x16xf32>
    %cst_5 = arith.constant dense<0.000000e+00> : vector<2x16xf32>
    %18 = vector.multi_reduction <add>, %17, %cst_5 [1] : vector<2x4x16xf32> to vector<2x16xf32>
    %19 = tpu.reciprocal %18 {approx = true} : vector<2x16xf32> -> vector<2x16xf32>
    %20 = arith.mulf %12, %19 : vector<2x16xf32>
    %c0_6 = arith.constant 0 : index
    %c0_7 = arith.constant 0 : index
    %21 = vector.load %arg4[%c0_6, %c0_7] : memref<2x16xf32, #tpu.memory_space<vmem>>, vector<2x16xf32>
    %22 = arith.maximumf %21, %20 : vector<2x16xf32>
    %c0_8 = arith.constant 0 : index
    %c0_9 = arith.constant 0 : index
    %23 = vector.load %arg4[%c0_8, %c0_9] : memref<2x16xf32, #tpu.memory_space<vmem>>, vector<2x16xf32>
    tpu.vector_store %arg4[%c0_8, %c0_9], %22 {strides = array<i32>} : memref<2x16xf32, #tpu.memory_space<vmem>>, vector<2x16xf32>,
    %c0_i32_10 = arith.constant 0 : i32
    %24 = arith.cmpi eq, %arg1, %c0_i32_10 : i32
    %25 = arith.extui %24 : i1 to i32
    %c0_i32_11 = arith.constant 0 : i32
    %26 = arith.cmpi ne, %25, %c0_i32_11 : i32
    scf.if %26 {
      %c0_12 = arith.constant 0 : index
      %c0_13 = arith.constant 0 : index
      %27 = vector.load %arg4[%c0_12, %c0_13] : memref<2x16xf32, #tpu.memory_space<vmem>>, vector<2x16xf32>
      %cst_14 = arith.constant dense<0xFF800000> : vector<2xf32>
      %28 = vector.multi_reduction <maximumf>, %27, %cst_14 [1] : vector<2x16xf32> to vector<2xf32>
      %29 = vector.shape_cast %28 : vector<2xf32> to vector<2x1xf32>
      %c0_15 = arith.constant 0 : index
      %c0_16 = arith.constant 0 : index
      %c0_17 = arith.constant 0 : index
      %30 = vector.load %arg3[%c0_15, %c0_16, %c0_17] : memref<1x2x1xf32, #tpu.memory_space<vmem>>, vector<1x2x1xf32>
      %31 = vector.shape_cast %30 : vector<1x2x1xf32> to vector<2x1xf32>
      %32 = vector.shape_cast %29 : vector<2x1xf32> to vector<1x2x1xf32>
      tpu.vector_store %arg3[%c0_15, %c0_16, %c0_17], %32 {strides = array<i32>} : memref<1x2x1xf32, #tpu.memory_space<vmem>>, vector<1x2x1xf32>,
    } else {
    }
    return
  }
  func.func @transform_0(%arg0: i32, %arg1: i32) -> (i32, i32, i32, i32) {
    %c0_i32 = arith.constant 0 : i32
    %c0_i32_0 = arith.constant 0 : i32
    %c0_i32_1 = arith.constant 0 : i32
    return %c0_i32, %arg0, %c0_i32_0, %arg1 : i32, i32, i32, i32
  }
  func.func @transform_1(%arg0: i32, %arg1: i32) -> (i32, i32, i32) {
    %c0_i32 = arith.constant 0 : i32
    %c0_i32_0 = arith.constant 0 : i32
    %c0_i32_1 = arith.constant 0 : i32
    return %arg0, %c0_i32, %c0_i32_0 : i32, i32, i32
  }
}

</mosaic_0001>

<llo_original>
// kernel: tpu_custom_call.1
$region0: #{tpu_custom_call.1}
  #allocation0 [shape = 'u32[]', space=smem, size = 0x4, offset = 0x4, fixed_abs, tag = 'smem constant byte address 0x4 - core index']
  #allocation1 [shape = 'u32[72,128]{1,0:T(1,128)}', space=vmem, size = 0x9000, scoped, tag = 'internal scratch']
  #allocation2 [shape = 'f32[2,16]{1,0:T(2,128)}', space=vmem, size = 0x400, scoped, tag = 'scratch operand']
  %s0 = inlined_call_operand.vmem [shape: f32[2,3,9,16], index: 0, kind: input, shape index: {}]
  %s1 = inlined_call_operand.vmem [shape: f32[3,2,1], index: 1, kind: output, shape index: {}]
  %s2 = sld [smem:[#allocation0]]
  $region83: #{tpu_custom_call.1} parent=0
    _
  %s4 = ssub.s32 1, %s2
  %s5 = scalar_select 0, %s4, %s2
  $region1: #{tpu_custom_call.1} parent=0
    #allocation3 [shape = 'u8[32768]{0}', space=vmem, size = 0x8000, scoped, tag = 'input window, operand 0']
    loop: start=0, step=1, limit=5
    $region2: #{tpu_custom_call.1} parent=1 // loop_pre_header
      _
    $region3: #{tpu_custom_call.1} parent=1 // loop_header
      %s7 = sphi 0, %s11
      %p8 = scmp.ge.s32.totalorder %s7, 5
      %s14 = sphi 0, %s26
      %s15 = sphi 0, %s22
      %s16 = sphi 0, %s14
      %s17 = sphi 0, %s15
      %s18 = sphi 0, %s16
      %s19 = sphi 0, %s17
      %s31 = sphi 0, %s33
      %s34 = sphi 0, %s31
      %s35 = sphi 0, %s34
      %s51 = sphi 0, %s35
      %s57 = sphi 0, %s59
      %s60 = sphi 0, %s57
      %s61 = sphi 0, %s60
      %s77 = sphi 0, %s61
    $region4: #{tpu_custom_call.1} parent=1 // loop_header_branch
      %10 = sbr.rel (%p8) target = $region8
    $region5: #{tpu_custom_call.1} parent=1 // loop_body
      %s12 = ssub.s32 %s7, 1
      %s13 = ssub.s32 %s7, 2
      %s20 = sadd.s32 1, %s15
      %p21 = scmp.ge.s32.totalorder %s20, 1
      %s22 = scalar_select %p21, 0, %s20
      %s23 = sadd.s32 1, %s14
      %s24 = scalar_select %p21, %s23, %s14
      %p25 = scmp.ge.s32.totalorder %s24, 3
      %s26 = scalar_select %p25, 0, %s24
      %s27 = ssub.s32 %s14, %s26
      %s28 = ssub.s32 %s15, %s22
      %s29 = sor.u32 %s27, %s28
      %p30 = scmp.eq.s32.totalorder %s29, 0
      %s32 = sadd.s32 %s31, 1
      %s33 = scalar_select %p30, %s31, %s32
      %p36 = pneg %p30
      %p37 = scmp.eq.s32.totalorder %s7, 2
      %p38 = por %p36, %p37
      %p39 = scmp.ne.s32.totalorder %s31, %s34
      %p40 = scmp.eq.s32.totalorder %s7, 0
      %p41 = por %p39, %p40
      %p42 = scmp.ne.s32.totalorder %s31, %s34
      %p43 = scmp.eq.s32.totalorder %s12, 2
      %p44 = por %p42, %p43
      %p45 = scmp.ne.s32.totalorder %s34, %s35
      %p46 = scmp.eq.s32.totalorder %s12, 0
      %p47 = por %p45, %p46
      %p48 = scmp.ne.s32.totalorder %s34, %s35
      %p49 = scmp.eq.s32.totalorder %s13, 2
      %p50 = por %p48, %p49
      %p52 = scmp.ne.s32.totalorder %s35, %s51
      %p53 = scmp.eq.s32.totalorder %s13, 0
      %p54 = por %p52, %p53
      %s55 = ssub.s32 %s14, %s26
      %p56 = scmp.eq.s32.totalorder %s55, 0
      %s58 = sadd.s32 %s57, 1
      %s59 = scalar_select %p56, %s57, %s58
      %p62 = pneg %p56
      %p63 = scmp.eq.s32.totalorder %s7, 2
      %p64 = por %p62, %p63
      %p65 = scmp.ne.s32.totalorder %s57, %s60
      %p66 = scmp.eq.s32.totalorder %s7, 0
      %p67 = por %p65, %p66
      %p68 = scmp.ne.s32.totalorder %s57, %s60
      %p69 = scmp.eq.s32.totalorder %s12, 2
      %p70 = por %p68, %p69
      %p71 = scmp.ne.s32.totalorder %s60, %s61
      %p72 = scmp.eq.s32.totalorder %s12, 0
      %p73 = por %p71, %p72
      %p74 = scmp.ne.s32.totalorder %s60, %s61
      %p75 = scmp.eq.s32.totalorder %s13, 2
      %p76 = por %p74, %p75
      %p78 = scmp.ne.s32.totalorder %s61, %s77
      %p79 = scmp.eq.s32.totalorder %s13, 0
      %p80 = por %p78, %p79
      %p81 = scmp.le.s32.totalorder 1, %s7
      %p82 = scmp.lt.s32.totalorder %s7, 4
      %p83 = pnand %p81, %p82
      %p84 = pneg %p83
      // Predicated region
      $region9: #{tpu_custom_call.1} parent=5 // pred_check
        _
      $region10: #{tpu_custom_call.1} parent=5 // pred_check_branch
        %86 = sbr.rel (%p83) target = $region12
      $region11: #{tpu_custom_call.1} parent=5 // pred_region
        %s87 = ssub.s32 %s7, 1
      $region12: #{tpu_custom_call.1} parent=5 // pred_fallthru
        _
      %p88 = scmp.lt.s32.totalorder %s7, 3
      // Predicated region
      $region13: #{tpu_custom_call.1} parent=5 // pred_check
        %p89 = pneg %p88
      $region14: #{tpu_custom_call.1} parent=5 // pred_check_branch
        %91 = sbr.rel (%p89) target = $region16
      $region15: #{tpu_custom_call.1} parent=5 // pred_region
        // Predicated region
        $region17: #{tpu_custom_call.1} parent=15 // pred_check
          %p92 = pneg %p41
        $region18: #{tpu_custom_call.1} parent=15 // pred_check_branch
          %94 = sbr.rel (%p92) target = $region20
        $region19: #{tpu_custom_call.1} parent=15 // pred_region
          %s95 = sand.u32 %s31, 1
          %s96 = sand.u32 %s31, 1
          %s97 = smul.addr %s96, 32
          %s98 = scalar_lea.vmem [#allocation3], %s97
          %s99 = smul.addr %s14, 2
          %s100 = sadd.s32 %s15, %s99
          %s101 = smul.addr %s100, 8
          %s102 = scalar_lea.vmem %s0, %s101
          // Predicated region
          $region21: #{tpu_custom_call.1} parent=19 // pred_check
            _
          $region22: #{tpu_custom_call.1} parent=19 // pred_check_branch
            %104 = sbr.rel (0) target = $region24
          $region23: #{tpu_custom_call.1} parent=19 // pred_region
            // Predicated region
            $region25: #{tpu_custom_call.1} parent=23 // pred_check
              _
            $region26: #{tpu_custom_call.1} parent=23 // pred_check_branch
              %106 = sbr.rel (0) target = $region28
            $region27: #{tpu_custom_call.1} parent=23 // pred_region
              // Predicated region
              $region40: #{tpu_custom_call.1} parent=27 // pred_check
                _
              $region41: #{tpu_custom_call.1} parent=27 // pred_check_branch
                %128 = sbr.rel (0) target = $region43
              $region42: #{tpu_custom_call.1} parent=27 // pred_region
                loop: start=0, step=1, limit=1
                $region44: #{tpu_custom_call.1} parent=42 // loop_pre_header
                  _
                $region45: #{tpu_custom_call.1} parent=42 // loop_header
                  %s130 = sphi 0, %s134
                  %p131 = scmp.ge.s32.totalorder %s130, 1
                  %s135 = sphi %s102, %s102
                  %s136 = sphi %s98, %s98
                $region46: #{tpu_custom_call.1} parent=42 // loop_header_branch
                  %133 = sbr.rel (%p131) target = $region50
                $region47: #{tpu_custom_call.1} parent=42 // loop_body
                  %v137 = vld [vmem:[%s135] sm:$0xff]
                  %138 = vst [vmem:[%s136] sm:$0xff] %v137
                  %v139 = vld [vmem:[%s135 + $0x8] sm:$0xff]
                  %140 = vst [vmem:[%s136 + $0x8] sm:$0xff] %v139
                  %v141 = vld [vmem:[%s135 + $0x30] sm:$0xff]
                  %142 = vst [vmem:[%s136 + $0x10] sm:$0xff] %v141
                  %v143 = vld [vmem:[%s135 + $0x38] sm:$0xff]
                  %144 = vst [vmem:[%s136 + $0x18] sm:$0xff] %v143
                $region48: #{tpu_custom_call.1} parent=42 // loop_footer
                  %s134 = sadd.s32 1, %s130
                $region49: #{tpu_custom_call.1} parent=42 // loop_footer_branch
                  %129 = sbr.rel target = $region45
                $region50: #{tpu_custom_call.1} parent=42 // loop_exit
                  _
              $region43: #{tpu_custom_call.1} parent=27 // pred_fallthru
                _
              // Predicated region
              $region51: #{tpu_custom_call.1} parent=27 // pred_check
                _
              $region52: #{tpu_custom_call.1} parent=27 // pred_check_branch
                %146 = sbr.rel target = $region54
              $region53: #{tpu_custom_call.1} parent=27 // pred_region
                _
              $region54: #{tpu_custom_call.1} parent=27 // pred_fallthru
                _
            $region28: #{tpu_custom_call.1} parent=23 // pred_fallthru
              _
            // Predicated region
            $region29: #{tpu_custom_call.1} parent=23 // pred_check
              _
            $region30: #{tpu_custom_call.1} parent=23 // pred_check_branch
              %108 = sbr.rel target = $region32
            $region31: #{tpu_custom_call.1} parent=23 // pred_region
              %s110 = ssub.s32 256, 1
              loop: start=0, step=1, limit=1
              $region33: #{tpu_custom_call.1} parent=31 // loop_pre_header
                _
              $region34: #{tpu_custom_call.1} parent=31 // loop_header
                %s112 = sphi 0, %s116
                %p113 = scmp.ge.s32.totalorder %s112, 1
                %s117 = sphi %s102, %s102
                %s118 = sphi %s98, %s98
              $region35: #{tpu_custom_call.1} parent=31 // loop_header_branch
                %115 = sbr.rel (%p113) target = $region39
              $region36: #{tpu_custom_call.1} parent=31 // loop_body
                %v119 = vld [vmem:[%s117] sm:%s110]
                %120 = vst [vmem:[%s118] sm:%s110] %v119
                %v121 = vld [vmem:[%s117 + $0x8] sm:%s110]
                %122 = vst [vmem:[%s118 + $0x8] sm:%s110] %v121
                %v123 = vld [vmem:[%s117 + $0x30] sm:%s110]
                %124 = vst [vmem:[%s118 + $0x10] sm:%s110] %v123
                %v125 = vld [vmem:[%s117 + $0x38] sm:%s110]
                %126 = vst [vmem:[%s118 + $0x18] sm:%s110] %v125
              $region37: #{tpu_custom_call.1} parent=31 // loop_footer
                %s116 = sadd.s32 1, %s112
              $region38: #{tpu_custom_call.1} parent=31 // loop_footer_branch
                %111 = sbr.rel target = $region34
              $region39: #{tpu_custom_call.1} parent=31 // loop_exit
                _
            $region32: #{tpu_custom_call.1} parent=23 // pred_fallthru
              _
          $region24: #{tpu_custom_call.1} parent=19 // pred_fallthru
            _
          %147 = vnop
        $region20: #{tpu_custom_call.1} parent=15 // pred_fallthru
          _
      $region16: #{tpu_custom_call.1} parent=5 // pred_fallthru
        _
      %p148 = scmp.le.s32.totalorder 1, %s7
      %p149 = scmp.lt.s32.totalorder %s7, 4
      %p150 = pnand %p148, %p149
      %p151 = pneg %p150
      // Predicated region
      $region55: #{tpu_custom_call.1} parent=5 // pred_check
        _
      $region56: #{tpu_custom_call.1} parent=5 // pred_check_branch
        %153 = sbr.rel (%p150) target = $region58
      $region57: #{tpu_custom_call.1} parent=5 // pred_region
        %s154 = ssub.s32 %s7, 1
        %s155 = sand.u32 %s34, 1
        %s156 = sand.u32 %s34, 1
        %s157 = smul.addr %s156, 32
        %s158 = scalar_lea.vmem [#allocation3], %s157
        // Predicated region
        $region59: #{tpu_custom_call.1} parent=57 // pred_check
          %p159 = pneg %p47
        $region60: #{tpu_custom_call.1} parent=57 // pred_check_branch
          %161 = sbr.rel (%p159) target = $region62
        $region61: #{tpu_custom_call.1} parent=57 // pred_region
          _
        $region62: #{tpu_custom_call.1} parent=57 // pred_fallthru
          _
        %s162 = sand.u32 %s34, 1
        %s163 = sand.u32 %s34, 1
        %s164 = smul.addr %s163, 32
        %s165 = scalar_lea.vmem [#allocation3], %s164
        %p166 = pneg %p47
        %p167 = pneg %p44
        %p168 = pneg %p73
        %p169 = pneg %p70
        %p170 = scmp.lt.s32.totalorder %s16, 2
        %s171 = scalar_select %p170, %s16, 2
        %s172 = smul.addr %s171, 2
        %s173 = scalar_lea.vmem %s1, %s172
        %p174 = scmp.lt.s32.totalorder %s16, 2
        %s175 = scalar_select %p174, %s16, 2
        %s176 = smul.addr %s175, 2
        %s177 = scalar_lea.vmem %s1, %s176
        %p178 = scmp.eq.s32.totalorder %s17, 0
        // Predicated region
        $region63: #{tpu_custom_call.1} parent=57 // pred_check
          %p179 = pneg %p178
        $region64: #{tpu_custom_call.1} parent=57 // pred_check_branch
          %181 = sbr.rel (%p179) target = $region66
        $region65: #{tpu_custom_call.1} parent=57 // pred_region
          %vm182 = vcmask 123904
          %183 = vst.msk [vmem:[#allocation2] sm:$0x3] %vm182, -inf
        $region66: #{tpu_custom_call.1} parent=57 // pred_fallthru
          _
        %v184 = vld [vmem:[%s158] sm:$0xff]
        %v185 = vld [vmem:[%s158 + $0x8] sm:$0x1]
        %v186 = vld [vmem:[%s158 + $0x10] sm:$0xff]
        %v187 = vld [vmem:[%s158 + $0x18] sm:$0x1]
        %v188 = vsub.f32 0.0, %v184
        %v189 = vsub.f32 0.0, %v186
        %v190 = vmul.f32 %v188, 1.442695
        %v191 = vpow.pop %v190
        %v192 = vmul.f32 %v189, 1.442695
        %v193 = vpow.pop %v192
        %v194 = vadd.f32 %v191, 1.0
        %v195 = vadd.f32 %v193, 1.0
        %v196 = vrcp.pop %v194
        %v197 = vrcp.pop %v195
        %v198 = vperm.slane %v184, 5
        %v199 = vperm.slane %v186, 5
        %v200 = vsub.f32 %v184, %v198
        %v201 = vsub.f32 %v185, %v198
        %v202 = vsub.f32 %v186, %v199
        %v203 = vsub.f32 %v187, %v199
        %v204 = vmul.f32 %v200, 1.442695
        %v205 = vpow.pop %v204
        %v206 = vmul.f32 %v201, 1.442695
        %v207 = vpow.pop %v206
        %v208 = vmul.f32 %v202, 1.442695
        %v209 = vpow.pop %v208
        %v210 = vmul.f32 %v203, 1.442695
        %v211 = vpow.pop %v210
        %vm216 = vcmask 1042432
        %v217 = vrot.slane %v205, 5
        %v218 = vrot.slane %v207, 5
        %v219 = vsel %vm216, %v217, %v218
        %v220 = vrot.slane %v209, 5
        %v221 = vrot.slane %v211, 5
        %v222 = vsel %vm216, %v220, %v221
        %vm225 = vcmask 125952
        %v226 = vsel %vm225, %v219, 0.0
        %v227 = vrot.slane %v226, 4
        %v228 = vadd.f32 %v226, %v227
        %v229 = vrot.slane %v228, 2
        %v230 = vadd.f32 %v228, %v229
        %v231 = vrot.slane %v230, 1
        %v232 = vadd.f32 %v230, %v231
        %v233 = vsel %vm225, %v222, 0.0
        %v234 = vrot.slane %v233, 4
        %v235 = vadd.f32 %v233, %v234
        %v236 = vrot.slane %v235, 2
        %v237 = vadd.f32 %v235, %v236
        %v238 = vrot.slane %v237, 1
        %v239 = vadd.f32 %v237, %v238
        %v240 = vrcp.pop %v232
        %v241 = vrcp.pop %v239
        %v242 = vmul.f32 %v196, %v240
        %v243 = vmul.f32 %v197, %v241
        %v244 = vld [vmem:[#allocation2] sm:$0x3]
        %v247 = vrot.slane %v242, 4
        %v248 = vrot.slane %v243, 3
        %vm249 = vcmask 1041409
        %v250 = vsel %vm249, %v248, %v247
        %v252 = vmax.f32 %v244, %v250
        %vm253 = vcmask 123904
        %254 = vst.msk [vmem:[#allocation2] sm:$0x3] %vm253, %v252
        // Predicated region
        $region67: #{tpu_custom_call.1} parent=57 // pred_check
          %p255 = pneg %p178
        $region68: #{tpu_custom_call.1} parent=57 // pred_check_branch
          %257 = sbr.rel (%p255) target = $region70
        $region69: #{tpu_custom_call.1} parent=57 // pred_region
          %v258 = vld [vmem:[#allocation2] sm:$0x3]
          %v259 = vsel %vm253, %v258, -inf
          %260 = vmax.xlane.f32.xlu0 %v259
          %v261 = vpop.xlane.xlu0 %260
          %vm262 = vcmask 1024
          %263 = vst.msk [vmem:[%s177] sm:$0x3] %vm262, %v261
        $region70: #{tpu_custom_call.1} parent=57 // pred_fallthru
          _
        %p264 = scmp.lt.s32.totalorder %s16, 2
        %s265 = scalar_select %p264, %s16, 2
        %s266 = smul.addr %s265, 2
        %s267 = scalar_lea.vmem %s1, %s266
        // Predicated region
        $region71: #{tpu_custom_call.1} parent=57 // pred_check
          %p268 = pneg %p70
        $region72: #{tpu_custom_call.1} parent=57 // pred_check_branch
          %270 = sbr.rel (%p268) target = $region74
        $region73: #{tpu_custom_call.1} parent=57 // pred_region
          _
        $region74: #{tpu_custom_call.1} parent=57 // pred_fallthru
          _
      $region58: #{tpu_custom_call.1} parent=5 // pred_fallthru
        _
      %p271 = scmp.le.s32.totalorder 2, %s7
      // Predicated region
      $region75: #{tpu_custom_call.1} parent=5 // pred_check
        %p272 = pneg %p271
      $region76: #{tpu_custom_call.1} parent=5 // pred_check_branch
        %274 = sbr.rel (%p272) target = $region78
      $region77: #{tpu_custom_call.1} parent=5 // pred_region
        %s275 = ssub.s32 %s7, 2
        // Predicated region
        $region79: #{tpu_custom_call.1} parent=77 // pred_check
          %p276 = pneg %p76
        $region80: #{tpu_custom_call.1} parent=77 // pred_check_branch
          %278 = sbr.rel (%p276) target = $region82
        $region81: #{tpu_custom_call.1} parent=77 // pred_region
          %p279 = scmp.lt.s32.totalorder %s18, 2
          %s280 = scalar_select %p279, %s18, 2
          %s281 = smul.addr %s280, 2
          %s282 = scalar_lea.vmem %s1, %s281
        $region82: #{tpu_custom_call.1} parent=77 // pred_fallthru
          _
      $region78: #{tpu_custom_call.1} parent=5 // pred_fallthru
        _
    $region6: #{tpu_custom_call.1} parent=1 // loop_footer
      %s11 = sadd.s32 1, %s7
    $region7: #{tpu_custom_call.1} parent=1 // loop_footer_branch
      %6 = sbr.rel target = $region3
    $region8: #{tpu_custom_call.1} parent=1 // loop_exit
      _

</llo_original>
